<compile_context>
chip_gen: v6e
topology: v6e:2x2x1
jax: 0.10.0
libtpu: 0.0.40
codegen_flags: <defaults>
</compile_context>

<pallas_src>
import functools

import jax
import jax.numpy as jnp
from jax.experimental import pallas as pl
from jax.experimental.pallas import tpu as pltpu

LN_EPS = 1e-5
LANE = 128
SUBLANE = 8
MIB = 1024 * 1024


def _round_up(x, m):
    return (x + m - 1) // m * m


def _cdiv(a, b):
    return -(-a // b)


def _vmem_capacity_bytes():
    try:
        return int(pltpu.get_tpu_info().vmem_capacity_bytes)
    except Exception:
        return 64 * MIB  # conservative (v7x-sized) fallback


def _visual_pos_embed_kernel(x_ref, w_ref, p_ref, pos_ref, o_ref, *, inv_d, n_p):
    # x_ref:   (tm, in_p)      rows = flattened (batch, padded-seq)
    # w_ref:   (in_p, out_p)   resident across grid steps (single-buffered)
    # p_ref:   (3, out_p)      rows: [bias, gamma, beta]  (f32, resident)
    # pos_ref: (n_p, out_p)    per-position table (f32, resident)
    # o_ref:   (tm, out_p)
    tm, out_p = o_ref.shape

    # Linear: x @ W on the MXU, f32 accumulate.
    h = jnp.dot(x_ref[...], w_ref[...], preferred_element_type=jnp.float32)

    bias = p_ref[0:1, :]
    gamma = p_ref[1:2, :]
    beta = p_ref[2:3, :]

    # Activation (ReLU stands in for any non-'none' cfg activation).
    h = jnp.maximum(h + bias, 0.0)

    # One-pass LayerNorm statistics over the *logical* out_dim.  Padded lanes
    # are exactly zero (zero weight cols / zero bias, relu(0)=0), so sums over
    # the padded width equal sums over the logical width.
    s = jnp.sum(h, axis=-1, keepdims=True)
    ss = jnp.sum(h * h, axis=-1, keepdims=True)
    mean = s * inv_d
    var = jnp.maximum(ss * inv_d - mean * mean, 0.0)   # guard tiny negatives
    h = (h - mean) * jax.lax.rsqrt(var + LN_EPS)
    h = h * gamma + beta

    # TODO(synk): dropout is identity here (inference mode); training-mode
    # dropout would use pltpu.prng_seed / pltpu.prng_random_bits.

    # Positional add: each tile holds tm // n_p whole (padded) sequences, so
    # the small resident table broadcasts over the leading dim — no
    # batch-broadcast position stream from HBM.
    h = h.reshape(tm // n_p, n_p, out_p) + pos_ref[...][None, :, :]
    o_ref[...] = h.reshape(tm, out_p).astype(o_ref.dtype)


def visual_pos_embedding(feats, w, b, ln_gamma, ln_beta, pos_table,
                         *, tile_m=None, compute_dtype=None, out_dtype=None):
    """feats: [B, N, in_dim] -> [B, N, out_dim]."""
    B, N, in_dim = feats.shape
    out_dim = w.shape[1]
    out_dtype = jnp.dtype(feats.dtype if out_dtype is None else out_dtype)
    x_dtype = jnp.dtype(feats.dtype if compute_dtype is None else compute_dtype)

    # Lane/sublane-aligned padded dims.
    in_p = _round_up(in_dim, LANE)
    out_p = _round_up(out_dim, LANE)
    n_p = _round_up(N, SUBLANE)

    x_bytes = x_dtype.itemsize
    o_bytes = out_dtype.itemsize

    # ---- generation-aware tile size & VMEM budget -------------------------
    vmem_cap = _vmem_capacity_bytes()
    small_vmem = vmem_cap <= 64 * MIB            # v7x: 64 MiB per TensorCore
    vmem_ceiling = 48 * MIB if small_vmem else 64 * MIB
    target_rows = 512 if small_vmem else 1024
    if tile_m is not None:
        target_rows = max(int(tile_m), n_p)

    # Resident (single-buffered) blocks: W, packed params, pos table.
    fixed_vmem = (in_p * out_p * x_bytes         # W
                  + SUBLANE * out_p * 4          # bias/gamma/beta (sublane pad)
                  + n_p * out_p * 4)             # pos table
    stream_per_row = 2 * (in_p * x_bytes + out_p * o_bytes)  # dbl-buffered x/out
    avail = vmem_ceiling - fixed_vmem - 4 * MIB
    # TODO(synk): if W alone overflows the budget (avail <= 0) a K-tiled
    # accumulator fallback would be needed; keep the fast resident-W path here.
    seqs_by_vmem = max(1, avail // (stream_per_row * n_p)) if avail > 0 else 1
    seqs_by_target = max(1, target_rows // n_p)
    # Keep >= 2 (>= 4 for larger B) grid steps so v7x's two TensorCores both
    # get work on the "parallel" row axis.
    if B >= 4:
        seqs_cap = max(1, B // 4)
    elif B >= 2:
        seqs_cap = max(1, B // 2)
    else:
        seqs_cap = 1
    seqs_per_tile = max(1, int(min(seqs_by_vmem, seqs_by_target, seqs_cap, B)))

    tm = seqs_per_tile * n_p
    grid_m = _cdiv(B, seqs_per_tile)
    b_pad = grid_m * seqs_per_tile
    m_p = b_pad * n_p
    M = B * N                                    # logical rows

    # ---- wrapper-side layout plumbing (single pad each) -------------------
    x = feats.astype(x_dtype)
    x = jnp.pad(x, ((0, b_pad - B), (0, n_p - N), (0, in_p - in_dim)))
    x2 = x.reshape(m_p, in_p)

    w_p = jnp.pad(w.astype(x_dtype), ((0, in_p - in_dim), (0, out_p - out_dim)))

    # Pack bias / gamma / beta into one (3, out_p) parameter block (f32).
    params = jnp.stack([b, ln_gamma, ln_beta]).astype(jnp.float32)
    params = jnp.pad(params, ((0, 0), (0, out_p - out_dim)))

    # Raw per-position table (no batch broadcast), padded to (n_p, out_p).
    pos_p = jnp.pad(pos_table.astype(jnp.float32),
                    ((0, n_p - N), (0, out_p - out_dim)))

    # Advisory cost estimate (logical traffic: x read, W, pos, out write).
    cost = pl.CostEstimate(
        flops=2 * M * in_dim * out_dim,
        transcendentals=M,  # one rsqrt per row
        bytes_accessed=int(M * in_dim * x_bytes
                           + in_dim * out_dim * x_bytes
                           + N * out_dim * 4
                           + M * out_dim * o_bytes),
    )

    # Generous limit (covers the double-buffered-constants fallback too),
    # clamped to the generation-aware ceiling.
    vmem_limit = int(min(max(2 * fixed_vmem + tm * stream_per_row + 4 * MIB,
                             32 * MIB),
                         vmem_ceiling))

    kernel = functools.partial(_visual_pos_embed_kernel,
                               inv_d=1.0 / float(out_dim), n_p=n_p)

    def call(single_buffer_consts):
        if single_buffer_consts:
            def const_spec(shape):
                return pl.BlockSpec(shape, lambda i: (0, 0),
                                    pipeline_mode=pl.Buffered(1))
        else:
            def const_spec(shape):
                return pl.BlockSpec(shape, lambda i: (0, 0))
        return pl.pallas_call(
            kernel,
            out_shape=jax.ShapeDtypeStruct((m_p, out_p), out_dtype),
            grid_spec=pltpu.PrefetchScalarGridSpec(
                num_scalar_prefetch=0,
                grid=(grid_m,),
                in_specs=[
                    pl.BlockSpec((tm, in_p), lambda i: (i, 0)),  # x rows (stream)
                    const_spec((in_p, out_p)),                   # W (resident)
                    const_spec((3, out_p)),                      # bias/gamma/beta
                    const_spec((n_p, out_p)),                    # pos table
                ],
                out_specs=pl.BlockSpec((tm, out_p), lambda i: (i, 0)),
            ),
            compiler_params=pltpu.CompilerParams(
                dimension_semantics=("parallel",),
                vmem_limit_bytes=vmem_limit,
            ),
            cost_estimate=cost,
        )(x2, w_p, params, pos_p)

    try:
        out = call(True)
    except Exception:
        # pl.Buffered(1) unsupported on this jax build: fall back to default
        # double-buffered constant blocks (same semantics, a bit more VMEM).
        out = call(False)

    out = out.reshape(b_pad, n_p, out_p)
    return out[:B, :N, :out_dim]


def reference(feats, w, b, ln_gamma, ln_beta, pos_table):
    h = jnp.einsum("bnd,de->bne", feats, w) + b
    h = jnp.maximum(h, 0.0)
    mean = jnp.mean(h, axis=-1, keepdims=True)
    var = jnp.mean((h - mean) ** 2, axis=-1, keepdims=True)
    h = (h - mean) * jax.lax.rsqrt(var + LN_EPS)
    h = h * ln_gamma + ln_beta
    return h + pos_table[None, :, :]


if __name__ == "__main__":
    B, N, in_dim, out_dim = 2, 8, 16, 32

    key = jax.random.PRNGKey(0)
    k_feat, k_w, k_b, k_g, k_beta, k_pos = jax.random.split(key, 6)

    feats = jax.random.normal(k_feat, (B, N, in_dim), dtype=jnp.float32)
    w = jax.random.normal(k_w, (in_dim, out_dim), dtype=jnp.float32) * (1.0 / in_dim ** 0.5)
    b = jax.random.normal(k_b, (out_dim,), dtype=jnp.float32) * 0.01
    ln_gamma = 1.0 + 0.1 * jax.random.normal(k_g, (out_dim,), dtype=jnp.float32)
    ln_beta = 0.05 * jax.random.normal(k_beta, (out_dim,), dtype=jnp.float32)
    pos_table = jax.random.normal(k_pos, (N, out_dim), dtype=jnp.float32) * 0.02

    ref = reference(feats, w, b, ln_gamma, ln_beta, pos_table)

    # f32 compute path (strict numerical check).
    out = visual_pos_embedding(feats, w, b, ln_gamma, ln_beta, pos_table)
    out = jax.block_until_ready(out)
    assert out.shape == (B, N, out_dim)
    assert jnp.allclose(out, ref, atol=1e-4, rtol=1e-4), "f32 mismatch vs reference"

    # bf16 x/W compute path (valid on v5e/v6e/v7x; LN chain stays f32).
    out_bf16 = visual_pos_embedding(feats, w, b, ln_gamma, ln_beta, pos_table,
                                    compute_dtype=jnp.bfloat16)
    out_bf16 = jax.block_until_ready(out_bf16)
    assert jnp.allclose(out_bf16, ref, atol=5e-2, rtol=5e-2), "bf16 mismatch vs reference"

    # Fully low-precision path: bf16 compute + bf16 output (halved write stream).
    out_lo = visual_pos_embedding(feats, w, b, ln_gamma, ln_beta, pos_table,
                                  compute_dtype=jnp.bfloat16,
                                  out_dtype=jnp.bfloat16)
    out_lo = jax.block_until_ready(out_lo)
    assert out_lo.dtype == jnp.bfloat16
    assert jnp.allclose(out_lo.astype(jnp.float32), ref, atol=7e-2, rtol=7e-2), \
        "bf16-out mismatch vs reference"

    print("KERNEL_OK")
</pallas_src>

<mosaic_0001>
module attributes {stable_mosaic.version = 11 : i64} {
  func.func @_visual_pos_embed_kernel(%arg0: i32, %arg1: memref<8x128xf32, #tpu.memory_space<vmem>>, %arg2: memref<128x128xf32, #tpu.memory_space<vmem>>, %arg3: memref<3x128xf32, #tpu.memory_space<vmem>>, %arg4: memref<8x128xf32, #tpu.memory_space<vmem>>, %arg5: memref<8x128xf32, #tpu.memory_space<vmem>>) attributes {dimension_semantics = [#tpu.dimension_semantics<parallel>], iteration_bounds = array<i64: 2>, scalar_prefetch = 0 : i64, scratch_operands = 0 : i64, tpu.core_type = #tpu.core_type<tc>, window_params = [{transform_indices = @transform_0, window_bounds = array<i64: 8, 128>}, {pipeline_mode = #tpu.pipeline_mode<synchronous>, transform_indices = @transform_1, window_bounds = array<i64: 128, 128>}, {pipeline_mode = #tpu.pipeline_mode<synchronous>, transform_indices = @transform_2, window_bounds = array<i64: 3, 128>}, {pipeline_mode = #tpu.pipeline_mode<synchronous>, transform_indices = @transform_3, window_bounds = array<i64: 8, 128>}, {transform_indices = @transform_4, window_bounds = array<i64: 8, 128>}]} {
    %c0 = arith.constant 0 : index
    %c0_0 = arith.constant 0 : index
    %0 = vector.load %arg1[%c0, %c0_0] : memref<8x128xf32, #tpu.memory_space<vmem>>, vector<8x128xf32>
    %c0_1 = arith.constant 0 : index
    %c0_2 = arith.constant 0 : index
    %1 = vector.load %arg2[%c0_1, %c0_2] : memref<128x128xf32, #tpu.memory_space<vmem>>, vector<128x128xf32>
    %cst = arith.constant dense<0.000000e+00> : vector<8x128xf32>
    %2 = tpu.matmul %0, %1, %cst {dimension_numbers = #tpu.dot_dimension_numbers<[1], [0], [0], [1], [0, 0, 1, 1], [], []>} : vector<8x128xf32>, vector<128x128xf32>, vector<8x128xf32> -> vector<8x128xf32>
    %c0_3 = arith.constant 0 : index
    %c0_4 = arith.constant 0 : index
    %3 = vector.load %arg3[%c0_3, %c0_4] : memref<3x128xf32, #tpu.memory_space<vmem>>, vector<1x128xf32>
    %c1 = arith.constant 1 : index
    %c0_5 = arith.constant 0 : index
    %4 = vector.load %arg3[%c1, %c0_5] : memref<3x128xf32, #tpu.memory_space<vmem>>, vector<1x128xf32>
    %c2 = arith.constant 2 : index
    %c0_6 = arith.constant 0 : index
    %5 = vector.load %arg3[%c2, %c0_6] : memref<3x128xf32, #tpu.memory_space<vmem>>, vector<1x128xf32>
    %6 = vector.broadcast %3 : vector<1x128xf32> to vector<8x128xf32>
    %7 = arith.addf %2, %6 : vector<8x128xf32>
    %cst_7 = arith.constant 0.000000e+00 : f32
    %8 = vector.broadcast %cst_7 : f32 to vector<8x128xf32>
    %9 = arith.maximumf %7, %8 : vector<8x128xf32>
    %cst_8 = arith.constant dense<0.000000e+00> : vector<8xf32>
    %10 = vector.multi_reduction <add>, %9, %cst_8 [1] : vector<8x128xf32> to vector<8xf32>
    %11 = vector.shape_cast %10 : vector<8xf32> to vector<8x1xf32>
    %12 = arith.mulf %9, %9 : vector<8x128xf32>
    %cst_9 = arith.constant dense<0.000000e+00> : vector<8xf32>
    %13 = vector.multi_reduction <add>, %12, %cst_9 [1] : vector<8x128xf32> to vector<8xf32>
    %14 = vector.shape_cast %13 : vector<8xf32> to vector<8x1xf32>
    %cst_10 = arith.constant 3.125000e-02 : f32
    %15 = vector.broadcast %cst_10 : f32 to vector<8x1xf32>
    %16 = arith.mulf %11, %15 : vector<8x1xf32>
    %cst_11 = arith.constant 3.125000e-02 : f32
    %17 = vector.broadcast %cst_11 : f32 to vector<8x1xf32>
    %18 = arith.mulf %14, %17 : vector<8x1xf32>
    %19 = arith.mulf %16, %16 : vector<8x1xf32>
    %20 = arith.subf %18, %19 : vector<8x1xf32>
    %cst_12 = arith.constant 0.000000e+00 : f32
    %21 = vector.broadcast %cst_12 : f32 to vector<8x1xf32>
    %22 = arith.maximumf %20, %21 : vector<8x1xf32>
    %23 = vector.broadcast %16 : vector<8x1xf32> to vector<8x128xf32>
    %24 = arith.subf %9, %23 : vector<8x128xf32>
    %cst_13 = arith.constant 9.99999974E-6 : f32
    %25 = vector.broadcast %cst_13 : f32 to vector<8x1xf32>
    %26 = arith.addf %22, %25 : vector<8x1xf32>
    %27 = math.rsqrt %26 : vector<8x1xf32>
    %28 = vector.broadcast %27 : vector<8x1xf32> to vector<8x128xf32>
    %29 = arith.mulf %24, %28 : vector<8x128xf32>
    %30 = vector.broadcast %4 : vector<1x128xf32> to vector<8x128xf32>
    %31 = arith.mulf %29, %30 : vector<8x128xf32>
    %32 = vector.broadcast %5 : vector<1x128xf32> to vector<8x128xf32>
    %33 = arith.addf %31, %32 : vector<8x128xf32>
    %34 = vector.shape_cast %33 : vector<8x128xf32> to vector<1x8x128xf32>
    %c0_14 = arith.constant 0 : index
    %c0_15 = arith.constant 0 : index
    %35 = vector.load %arg4[%c0_14, %c0_15] : memref<8x128xf32, #tpu.memory_space<vmem>>, vector<8x128xf32>
    %36 = vector.shape_cast %35 : vector<8x128xf32> to vector<1x8x128xf32>
    %37 = arith.addf %34, %36 : vector<1x8x128xf32>
    %38 = vector.shape_cast %37 : vector<1x8x128xf32> to vector<8x128xf32>
    %c0_16 = arith.constant 0 : index
    %c0_17 = arith.constant 0 : index
    %39 = vector.load %arg5[%c0_16, %c0_17] : memref<8x128xf32, #tpu.memory_space<vmem>>, vector<8x128xf32>
    tpu.vector_store %arg5[%c0_16, %c0_17], %38 {strides = array<i32>} : memref<8x128xf32, #tpu.memory_space<vmem>>, vector<8x128xf32>,
    return
  }
  func.func @transform_0(%arg0: i32) -> (i32, i32) {
    %c0_i32 = arith.constant 0 : i32
    %c0_i32_0 = arith.constant 0 : i32
    return %arg0, %c0_i32 : i32, i32
  }
  func.func @transform_1(%arg0: i32) -> (i32, i32) {
    %c0_i32 = arith.constant 0 : i32
    %c0_i32_0 = arith.constant 0 : i32
    %c0_i32_1 = arith.constant 0 : i32
    return %c0_i32, %c0_i32_0 : i32, i32
  }
  func.func @transform_2(%arg0: i32) -> (i32, i32) {
    %c0_i32 = arith.constant 0 : i32
    %c0_i32_0 = arith.constant 0 : i32
    %c0_i32_1 = arith.constant 0 : i32
    return %c0_i32, %c0_i32_0 : i32, i32
  }
  func.func @transform_3(%arg0: i32) -> (i32, i32) {
    %c0_i32 = arith.constant 0 : i32
    %c0_i32_0 = arith.constant 0 : i32
    %c0_i32_1 = arith.constant 0 : i32
    return %c0_i32, %c0_i32_0 : i32, i32
  }
  func.func @transform_4(%arg0: i32) -> (i32, i32) {
    %c0_i32 = arith.constant 0 : i32
    %c0_i32_0 = arith.constant 0 : i32
    return %arg0, %c0_i32 : i32, i32
  }
}

module attributes {stable_mosaic.version = 11 : i64} {
  func.func @_visual_pos_embed_kernel(%arg0: i32, %arg1: memref<8x128xf32, #tpu.memory_space<vmem>>, %arg2: memref<128x128xf32, #tpu.memory_space<vmem>>, %arg3: memref<3x128xf32, #tpu.memory_space<vmem>>, %arg4: memref<8x128xf32, #tpu.memory_space<vmem>>, %arg5: memref<8x128xf32, #tpu.memory_space<vmem>>) attributes {dimension_semantics = [#tpu.dimension_semantics<parallel>], iteration_bounds = array<i64: 2>, scalar_prefetch = 0 : i64, scratch_operands = 0 : i64, tpu.core_type = #tpu.core_type<tc>, window_params = [{transform_indices = @transform_0, window_bounds = array<i64: 8, 128>}, {pipeline_mode = #tpu.pipeline_mode<synchronous>, transform_indices = @transform_1, window_bounds = array<i64: 128, 128>}, {pipeline_mode = #tpu.pipeline_mode<synchronous>, transform_indices = @transform_2, window_bounds = array<i64: 3, 128>}, {pipeline_mode = #tpu.pipeline_mode<synchronous>, transform_indices = @transform_3, window_bounds = array<i64: 8, 128>}, {transform_indices = @transform_4, window_bounds = array<i64: 8, 128>}]} {
    %c0 = arith.constant 0 : index
    %c0_0 = arith.constant 0 : index
    %0 = vector.load %arg1[%c0, %c0_0] : memref<8x128xf32, #tpu.memory_space<vmem>>, vector<8x128xf32>
    %c0_1 = arith.constant 0 : index
    %c0_2 = arith.constant 0 : index
    %1 = vector.load %arg2[%c0_1, %c0_2] : memref<128x128xf32, #tpu.memory_space<vmem>>, vector<128x128xf32>
    %cst = arith.constant dense<0.000000e+00> : vector<8x128xf32>
    %2 = tpu.matmul %0, %1, %cst {dimension_numbers = #tpu.dot_dimension_numbers<[1], [0], [0], [1], [0, 0, 1, 1], [], []>} : vector<8x128xf32>, vector<128x128xf32>, vector<8x128xf32> -> vector<8x128xf32>
    %c0_3 = arith.constant 0 : index
    %c0_4 = arith.constant 0 : index
    %3 = vector.load %arg3[%c0_3, %c0_4] : memref<3x128xf32, #tpu.memory_space<vmem>>, vector<1x128xf32>
    %c1 = arith.constant 1 : index
    %c0_5 = arith.constant 0 : index
    %4 = vector.load %arg3[%c1, %c0_5] : memref<3x128xf32, #tpu.memory_space<vmem>>, vector<1x128xf32>
    %c2 = arith.constant 2 : index
    %c0_6 = arith.constant 0 : index
    %5 = vector.load %arg3[%c2, %c0_6] : memref<3x128xf32, #tpu.memory_space<vmem>>, vector<1x128xf32>
    %6 = vector.broadcast %3 : vector<1x128xf32> to vector<8x128xf32>
    %7 = arith.addf %2, %6 : vector<8x128xf32>
    %cst_7 = arith.constant 0.000000e+00 : f32
    %8 = vector.broadcast %cst_7 : f32 to vector<8x128xf32>
    %9 = arith.maximumf %7, %8 : vector<8x128xf32>
    %cst_8 = arith.constant dense<0.000000e+00> : vector<8xf32>
    %10 = vector.multi_reduction <add>, %9, %cst_8 [1] : vector<8x128xf32> to vector<8xf32>
    %11 = vector.shape_cast %10 : vector<8xf32> to vector<8x1xf32>
    %12 = arith.mulf %9, %9 : vector<8x128xf32>
    %cst_9 = arith.constant dense<0.000000e+00> : vector<8xf32>
    %13 = vector.multi_reduction <add>, %12, %cst_9 [1] : vector<8x128xf32> to vector<8xf32>
    %14 = vector.shape_cast %13 : vector<8xf32> to vector<8x1xf32>
    %cst_10 = arith.constant 3.125000e-02 : f32
    %15 = vector.broadcast %cst_10 : f32 to vector<8x1xf32>
    %16 = arith.mulf %11, %15 : vector<8x1xf32>
    %cst_11 = arith.constant 3.125000e-02 : f32
    %17 = vector.broadcast %cst_11 : f32 to vector<8x1xf32>
    %18 = arith.mulf %14, %17 : vector<8x1xf32>
    %19 = arith.mulf %16, %16 : vector<8x1xf32>
    %20 = arith.subf %18, %19 : vector<8x1xf32>
    %cst_12 = arith.constant 0.000000e+00 : f32
    %21 = vector.broadcast %cst_12 : f32 to vector<8x1xf32>
    %22 = arith.maximumf %20, %21 : vector<8x1xf32>
    %23 = vector.broadcast %16 : vector<8x1xf32> to vector<8x128xf32>
    %24 = arith.subf %9, %23 : vector<8x128xf32>
    %cst_13 = arith.constant 9.99999974E-6 : f32
    %25 = vector.broadcast %cst_13 : f32 to vector<8x1xf32>
    %26 = arith.addf %22, %25 : vector<8x1xf32>
    %27 = math.rsqrt %26 : vector<8x1xf32>
    %28 = vector.broadcast %27 : vector<8x1xf32> to vector<8x128xf32>
    %29 = arith.mulf %24, %28 : vector<8x128xf32>
    %30 = vector.broadcast %4 : vector<1x128xf32> to vector<8x128xf32>
    %31 = arith.mulf %29, %30 : vector<8x128xf32>
    %32 = vector.broadcast %5 : vector<1x128xf32> to vector<8x128xf32>
    %33 = arith.addf %31, %32 : vector<8x128xf32>
    %34 = vector.shape_cast %33 : vector<8x128xf32> to vector<1x8x128xf32>
    %c0_14 = arith.constant 0 : index
    %c0_15 = arith.constant 0 : index
    %35 = vector.load %arg4[%c0_14, %c0_15] : memref<8x128xf32, #tpu.memory_space<vmem>>, vector<8x128xf32>
    %36 = vector.shape_cast %35 : vector<8x128xf32> to vector<1x8x128xf32>
    %37 = arith.addf %34, %36 : vector<1x8x128xf32>
    %38 = vector.shape_cast %37 : vector<1x8x128xf32> to vector<8x128xf32>
    %c0_16 = arith.constant 0 : index
    %c0_17 = arith.constant 0 : index
    %39 = vector.load %arg5[%c0_16, %c0_17] : memref<8x128xf32, #tpu.memory_space<vmem>>, vector<8x128xf32>
    tpu.vector_store %arg5[%c0_16, %c0_17], %38 {strides = array<i32>} : memref<8x128xf32, #tpu.memory_space<vmem>>, vector<8x128xf32>,
    return
  }
  func.func @transform_0(%arg0: i32) -> (i32, i32) {
    %c0_i32 = arith.constant 0 : i32
    %c0_i32_0 = arith.constant 0 : i32
    return %arg0, %c0_i32 : i32, i32
  }
  func.func @transform_1(%arg0: i32) -> (i32, i32) {
    %c0_i32 = arith.constant 0 : i32
    %c0_i32_0 = arith.constant 0 : i32
    %c0_i32_1 = arith.constant 0 : i32
    return %c0_i32, %c0_i32_0 : i32, i32
  }
  func.func @transform_2(%arg0: i32) -> (i32, i32) {
    %c0_i32 = arith.constant 0 : i32
    %c0_i32_0 = arith.constant 0 : i32
    %c0_i32_1 = arith.constant 0 : i32
    return %c0_i32, %c0_i32_0 : i32, i32
  }
  func.func @transform_3(%arg0: i32) -> (i32, i32) {
    %c0_i32 = arith.constant 0 : i32
    %c0_i32_0 = arith.constant 0 : i32
    %c0_i32_1 = arith.constant 0 : i32
    return %c0_i32, %c0_i32_0 : i32, i32
  }
  func.func @transform_4(%arg0: i32) -> (i32, i32) {
    %c0_i32 = arith.constant 0 : i32
    %c0_i32_0 = arith.constant 0 : i32
    return %arg0, %c0_i32 : i32, i32
  }
}

</mosaic_0001>

<llo_original>
// kernel: tpu_custom_call.1
$region0: #{tpu_custom_call.1}
  #allocation0 [shape = 'u32[]', space=smem, size = 0x4, offset = 0x4, fixed_abs, tag = 'smem constant byte address 0x4 - core index']
  #allocation1 [shape = 'u32[144,128]{1,0:T(1,128)}', space=vmem, size = 0x12000, scoped, tag = 'internal scratch']
  %s0 = inlined_call_operand.hbm [shape: f32[16,128], index: 0, kind: input, shape index: {}]
  %s1 = inlined_call_operand.hbm [shape: f32[128,128], index: 1, kind: input, shape index: {}]
  %s2 = inlined_call_operand.hbm [shape: f32[3,128], index: 2, kind: input, shape index: {}]
  %s3 = inlined_call_operand.hbm [shape: f32[8,128], index: 3, kind: input, shape index: {}]
  %s4 = inlined_call_operand.hbm [shape: f32[16,128], index: 4, kind: output, shape index: {}]
  %s5 = sld [smem:[#allocation0]]
  $region65: #{tpu_custom_call.1} parent=0
    _
  %s7 = ssub.s32 1, %s5
  %s8 = scalar_select 0, %s7, %s5
  $region1: #{tpu_custom_call.1} parent=0
    #allocation2 [shape = 'u8[8192]{0}', space=vmem, size = 0x2000, scoped, tag = 'input window, operand 0']
    #allocation3 [shape = 's32[2]{0}', space=sflag, size = 0x8, scoped, tag = 'scoped memory for tpu_custom_call.1']
    #allocation4 [shape = 's32[2]{0}', space=sflag, size = 0x8, scoped, tag = 'scoped memory for tpu_custom_call.1']
    #allocation5 [shape = 'u8[65536]{0}', space=vmem, size = 0x10000, scoped, tag = 'input window, operand 1, single buffered']
    #allocation6 [shape = 's32[1]{0}', space=sflag, size = 0x4, scoped, tag = 'scoped memory for tpu_custom_call.1']
    #allocation7 [shape = 'u8[2048]{0}', space=vmem, size = 0x800, scoped, tag = 'input window, operand 2, single buffered']
    #allocation8 [shape = 'u8[4096]{0}', space=vmem, size = 0x1000, scoped, tag = 'input window, operand 3, single buffered']
    #allocation9 [shape = 's32[1]{0}', space=sflag, size = 0x4, scoped, tag = 'scoped memory for tpu_custom_call.1']
    #allocation10 [shape = 'u8[8192]{0}', space=vmem, size = 0x2000, scoped, tag = 'output window, operand 0']
    %9 = vsyncpa [#allocation3], 0
    %s10 = scalar_lea.sflag [#allocation3], 1
    %11 = vsyncpa %s10, 0
    %12 = vsyncpa [#allocation6], 0
    %13 = vsyncpa [#allocation9], 0
    %14 = vsyncpa [#allocation4], 0
    %s15 = scalar_lea.sflag [#allocation4], 1
    %16 = vsyncpa %s15, 0
    loop: start=0, step=1, limit=4
    $region2: #{tpu_custom_call.1} parent=1 // loop_pre_header
      _
    $region3: #{tpu_custom_call.1} parent=1 // loop_header
      %s18 = sphi 0, %s22
      %p19 = scmp.ge.s32.totalorder %s18, 4
      %s28 = sphi 0, %s30
      %s31 = sphi 0, %s28
      %s32 = sphi 0, %s31
      %s48 = sphi 0, %s32
      %s52 = sphi 0, %s52
      %s54 = sphi 0, %s52
      %s55 = sphi 0, %s54
      %s69 = sphi 0, %s55
      %s73 = sphi 0, %s73
      %s75 = sphi 0, %s73
      %s76 = sphi 0, %s75
      %s90 = sphi 0, %s76
      %s94 = sphi 0, %s94
      %s96 = sphi 0, %s94
      %s97 = sphi 0, %s96
      %s111 = sphi 0, %s97
      %s117 = sphi 0, %s119
      %s120 = sphi 0, %s117
      %s121 = sphi 0, %s120
      %s137 = sphi 0, %s121
    $region4: #{tpu_custom_call.1} parent=1 // loop_header_branch
      %21 = sbr.rel (%p19) target = $region8
    $region5: #{tpu_custom_call.1} parent=1 // loop_body
      %s23 = ssub.s32 %s18, 1
      %s24 = ssub.s32 %s18, 2
      %s25 = sadd.s32 %s18, 1
      %s26 = ssub.s32 %s18, %s25
      %p27 = scmp.eq.s32.totalorder %s26, 0
      %s29 = sadd.s32 %s28, 1
      %s30 = scalar_select %p27, %s28, %s29
      %p33 = pneg %p27
      %p34 = scmp.eq.s32.totalorder %s18, 1
      %p35 = por %p33, %p34
      %p36 = scmp.ne.s32.totalorder %s28, %s31
      %p37 = scmp.eq.s32.totalorder %s18, 0
      %p38 = por %p36, %p37
      %p39 = scmp.ne.s32.totalorder %s28, %s31
      %p40 = scmp.eq.s32.totalorder %s23, 1
      %p41 = por %p39, %p40
      %p42 = scmp.ne.s32.totalorder %s31, %s32
      %p43 = scmp.eq.s32.totalorder %s23, 0
      %p44 = por %p42, %p43
      %p45 = scmp.ne.s32.totalorder %s31, %s32
      %p46 = scmp.eq.s32.totalorder %s24, 1
      %p47 = por %p45, %p46
      %p49 = scmp.ne.s32.totalorder %s32, %s48
      %p50 = scmp.eq.s32.totalorder %s24, 0
      %p51 = por %p49, %p50
      %s53 = sadd.s32 %s52, 1
      %p56 = scmp.eq.s32.totalorder %s18, 1
      %p57 = scmp.ne.s32.totalorder %s52, %s54
      %p58 = scmp.eq.s32.totalorder %s18, 0
      %p59 = por %p57, %p58
      %p60 = scmp.ne.s32.totalorder %s52, %s54
      %p61 = scmp.eq.s32.totalorder %s23, 1
      %p62 = por %p60, %p61
      %p63 = scmp.ne.s32.totalorder %s54, %s55
      %p64 = scmp.eq.s32.totalorder %s23, 0
      %p65 = por %p63, %p64
      %p66 = scmp.ne.s32.totalorder %s54, %s55
      %p67 = scmp.eq.s32.totalorder %s24, 1
      %p68 = por %p66, %p67
      %p70 = scmp.ne.s32.totalorder %s55, %s69
      %p71 = scmp.eq.s32.totalorder %s24, 0
      %p72 = por %p70, %p71
      %s74 = sadd.s32 %s73, 1
      %p77 = scmp.eq.s32.totalorder %s18, 1
      %p78 = scmp.ne.s32.totalorder %s73, %s75
      %p79 = scmp.eq.s32.totalorder %s18, 0
      %p80 = por %p78, %p79
      %p81 = scmp.ne.s32.totalorder %s73, %s75
      %p82 = scmp.eq.s32.totalorder %s23, 1
      %p83 = por %p81, %p82
      %p84 = scmp.ne.s32.totalorder %s75, %s76
      %p85 = scmp.eq.s32.totalorder %s23, 0
      %p86 = por %p84, %p85
      %p87 = scmp.ne.s32.totalorder %s75, %s76
      %p88 = scmp.eq.s32.totalorder %s24, 1
      %p89 = por %p87, %p88
      %p91 = scmp.ne.s32.totalorder %s76, %s90
      %p92 = scmp.eq.s32.totalorder %s24, 0
      %p93 = por %p91, %p92
      %s95 = sadd.s32 %s94, 1
      %p98 = scmp.eq.s32.totalorder %s18, 1
      %p99 = scmp.ne.s32.totalorder %s94, %s96
      %p100 = scmp.eq.s32.totalorder %s18, 0
      %p101 = por %p99, %p100
      %p102 = scmp.ne.s32.totalorder %s94, %s96
      %p103 = scmp.eq.s32.totalorder %s23, 1
      %p104 = por %p102, %p103
      %p105 = scmp.ne.s32.totalorder %s96, %s97
      %p106 = scmp.eq.s32.totalorder %s23, 0
      %p107 = por %p105, %p106
      %p108 = scmp.ne.s32.totalorder %s96, %s97
      %p109 = scmp.eq.s32.totalorder %s24, 1
      %p110 = por %p108, %p109
      %p112 = scmp.ne.s32.totalorder %s97, %s111
      %p113 = scmp.eq.s32.totalorder %s24, 0
      %p114 = por %p112, %p113
      %s115 = ssub.s32 %s18, %s25
      %p116 = scmp.eq.s32.totalorder %s115, 0
      %s118 = sadd.s32 %s117, 1
      %s119 = scalar_select %p116, %s117, %s118
      %p122 = pneg %p116
      %p123 = scmp.eq.s32.totalorder %s18, 1
      %p124 = por %p122, %p123
      %p125 = scmp.ne.s32.totalorder %s117, %s120
      %p126 = scmp.eq.s32.totalorder %s18, 0
      %p127 = por %p125, %p126
      %p128 = scmp.ne.s32.totalorder %s117, %s120
      %p129 = scmp.eq.s32.totalorder %s23, 1
      %p130 = por %p128, %p129
      %p131 = scmp.ne.s32.totalorder %s120, %s121
      %p132 = scmp.eq.s32.totalorder %s23, 0
      %p133 = por %p131, %p132
      %p134 = scmp.ne.s32.totalorder %s120, %s121
      %p135 = scmp.eq.s32.totalorder %s24, 1
      %p136 = por %p134, %p135
      %p138 = scmp.ne.s32.totalorder %s121, %s137
      %p139 = scmp.eq.s32.totalorder %s24, 0
      %p140 = por %p138, %p139
      %p141 = scmp.le.s32.totalorder 1, %s18
      %p142 = scmp.lt.s32.totalorder %s18, 3
      %p143 = pnand %p141, %p142
      %p144 = pneg %p143
      // Predicated region
      $region9: #{tpu_custom_call.1} parent=5 // pred_check
        _
      $region10: #{tpu_custom_call.1} parent=5 // pred_check_branch
        %146 = sbr.rel (%p143) target = $region12
      $region11: #{tpu_custom_call.1} parent=5 // pred_region
        %s147 = ssub.s32 %s18, 1
        // Predicated region
        $region13: #{tpu_custom_call.1} parent=11 // pred_check
          %p148 = pneg %p65
        $region14: #{tpu_custom_call.1} parent=11 // pred_check_branch
          %150 = sbr.rel (%p148) target = $region16
        $region15: #{tpu_custom_call.1} parent=11 // pred_region
          %s152 = ssub.s32 2048, 2048
          %153 = vsyncadd [#allocation6], %s152
          %s154 = sshll.u32 [#allocation5], 4
          %s155 = int_to_ptr.vmem [resolvable:$true] %s154
          %160 = dma.hbm_to_vmem [thread:$0]  %s1, 2048, %s155, [#allocation6], 128, 128, 8
        $region16: #{tpu_custom_call.1} parent=11 // pred_fallthru
          _
        // Predicated region
        $region17: #{tpu_custom_call.1} parent=11 // pred_check
          %p161 = pneg %p86
        $region18: #{tpu_custom_call.1} parent=11 // pred_check_branch
          %163 = sbr.rel (%p161) target = $region20
        $region19: #{tpu_custom_call.1} parent=11 // pred_region
          %s165 = ssub.s32 64, 64
          %166 = vsyncadd [#allocation6], %s165
          %s168 = sshll.u32 [#allocation7], 4
          %s169 = int_to_ptr.vmem [resolvable:$true] %s168
          %171 = dma.hbm_to_vmem [thread:$0]  %s2, 64, %s169, [#allocation6]
        $region20: #{tpu_custom_call.1} parent=11 // pred_fallthru
          _
        // Predicated region
        $region21: #{tpu_custom_call.1} parent=11 // pred_check
          %p172 = pneg %p107
        $region22: #{tpu_custom_call.1} parent=11 // pred_check_branch
          %174 = sbr.rel (%p172) target = $region24
        $region23: #{tpu_custom_call.1} parent=11 // pred_region
          %s176 = ssub.s32 128, 128
          %177 = vsyncadd [#allocation9], %s176
          %s179 = sshll.u32 [#allocation8], 4
          %s180 = int_to_ptr.vmem [resolvable:$true] %s179
          %182 = dma.hbm_to_vmem [thread:$0]  %s3, 128, %s180, [#allocation9]
        $region24: #{tpu_custom_call.1} parent=11 // pred_fallthru
          _
      $region12: #{tpu_custom_call.1} parent=5 // pred_fallthru
        _
      %p183 = scmp.lt.s32.totalorder %s18, 2
      // Predicated region
      $region25: #{tpu_custom_call.1} parent=5 // pred_check
        %p184 = pneg %p183
      $region26: #{tpu_custom_call.1} parent=5 // pred_check_branch
        %186 = sbr.rel (%p184) target = $region28
      $region27: #{tpu_custom_call.1} parent=5 // pred_region
        // Predicated region
        $region29: #{tpu_custom_call.1} parent=27 // pred_check
          %p187 = pneg %p38
        $region30: #{tpu_custom_call.1} parent=27 // pred_check_branch
          %189 = sbr.rel (%p187) target = $region32
        $region31: #{tpu_custom_call.1} parent=27 // pred_region
          %s190 = sand.u32 %s28, 1
          %s191 = scalar_lea.sflag [#allocation3], %s190
          %s192 = sand.u32 %s28, 1
          %s193 = smul.addr %s192, 8
          %s194 = scalar_lea.vmem [#allocation2], %s193
          %s196 = ssub.s32 128, 128
          %197 = vsyncadd %s191, %s196
          %s198 = smul.addr %s18, 128
          %s199 = scalar_lea.hbm %s0, %s198
          %s201 = sshll.u32 %s194, 4
          %s202 = int_to_ptr.vmem [resolvable:$true] %s201
          %204 = dma.hbm_to_vmem [thread:$0]  %s199, 128, %s202, %s191
        $region32: #{tpu_custom_call.1} parent=27 // pred_fallthru
          _
      $region28: #{tpu_custom_call.1} parent=5 // pred_fallthru
        _
      %p205 = scmp.le.s32.totalorder 1, %s18
      %p206 = scmp.lt.s32.totalorder %s18, 3
      %p207 = pnand %p205, %p206
      %p208 = pneg %p207
      // Predicated region
      $region33: #{tpu_custom_call.1} parent=5 // pred_check
        _
      $region34: #{tpu_custom_call.1} parent=5 // pred_check_branch
        %210 = sbr.rel (%p207) target = $region36
      $region35: #{tpu_custom_call.1} parent=5 // pred_region
        %s211 = ssub.s32 %s18, 1
        %s212 = sand.u32 %s31, 1
        %s213 = scalar_lea.sflag [#allocation3], %s212
        %s214 = sand.u32 %s31, 1
        %s215 = smul.addr %s214, 8
        %s216 = scalar_lea.vmem [#allocation2], %s215
        // Predicated region
        $region37: #{tpu_custom_call.1} parent=35 // pred_check
          %p217 = pneg %p44
        $region38: #{tpu_custom_call.1} parent=35 // pred_check_branch
          %219 = sbr.rel (%p217) target = $region40
        $region39: #{tpu_custom_call.1} parent=35 // pred_region
          %220 = dma.done %s213, 128
        $region40: #{tpu_custom_call.1} parent=35 // pred_fallthru
          _
        // Predicated region
        $region41: #{tpu_custom_call.1} parent=35 // pred_check
          %p221 = pneg %p65
        $region42: #{tpu_custom_call.1} parent=35 // pred_check_branch
          %223 = sbr.rel (%p221) target = $region44
        $region43: #{tpu_custom_call.1} parent=35 // pred_region
          %224 = dma.done [#allocation6], 2048
        $region44: #{tpu_custom_call.1} parent=35 // pred_fallthru
          _
        // Predicated region
        $region45: #{tpu_custom_call.1} parent=35 // pred_check
          %p225 = pneg %p86
        $region46: #{tpu_custom_call.1} parent=35 // pred_check_branch
          %227 = sbr.rel (%p225) target = $region48
        $region47: #{tpu_custom_call.1} parent=35 // pred_region
          %228 = dma.done [#allocation6], 64
        $region48: #{tpu_custom_call.1} parent=35 // pred_fallthru
          _
        // Predicated region
        $region49: #{tpu_custom_call.1} parent=35 // pred_check
          %p229 = pneg %p107
        $region50: #{tpu_custom_call.1} parent=35 // pred_check_branch
          %231 = sbr.rel (%p229) target = $region52
        $region51: #{tpu_custom_call.1} parent=35 // pred_region
          %232 = dma.done [#allocation9], 128
        $region52: #{tpu_custom_call.1} parent=35 // pred_fallthru
          _
        %s233 = sand.u32 %s31, 1
        %s234 = scalar_lea.sflag [#allocation3], %s233
        %s235 = sand.u32 %s31, 1
        %s236 = smul.addr %s235, 8
        %s237 = scalar_lea.vmem [#allocation2], %s236
        %p238 = pneg %p44
        %p239 = pneg %p41
        %p240 = pneg %p65
        %p241 = pneg %p62
        %p242 = pneg %p86
        %p243 = pneg %p83
        %p244 = pneg %p107
        %p245 = pneg %p104
        %p246 = pneg %p133
        %p247 = pneg %p130
        %s248 = sand.u32 %s120, 1
        %s249 = scalar_lea.sflag [#allocation4], %s248
        %s250 = sand.u32 %s120, 1
        %s251 = smul.addr %s250, 8
        %s252 = scalar_lea.vmem [#allocation10], %s251
        %v253 = vld [vmem:[%s216] sm:$0xff]
        %v254 = vld [vmem:[#allocation5] sm:$0xff]
        %v255 = vld [vmem:[#allocation5 + $0x8] sm:$0xff]
        %v256 = vld [vmem:[#allocation5 + $0x10] sm:$0xff]
        %v257 = vld [vmem:[#allocation5 + $0x18] sm:$0xff]
        %v258 = vld [vmem:[#allocation5 + $0x20] sm:$0xff]
        %v259 = vld [vmem:[#allocation5 + $0x28] sm:$0xff]
        %v260 = vld [vmem:[#allocation5 + $0x30] sm:$0xff]
        %v261 = vld [vmem:[#allocation5 + $0x38] sm:$0xff]
        %v262 = vld [vmem:[#allocation5 + $0x40] sm:$0xff]
        %v263 = vld [vmem:[#allocation5 + $0x48] sm:$0xff]
        %v264 = vld [vmem:[#allocation5 + $0x50] sm:$0xff]
        %v265 = vld [vmem:[#allocation5 + $0x58] sm:$0xff]
        %v266 = vld [vmem:[#allocation5 + $0x60] sm:$0xff]
        %v267 = vld [vmem:[#allocation5 + $0x68] sm:$0xff]
        %v268 = vld [vmem:[#allocation5 + $0x70] sm:$0xff]
        %v269 = vld [vmem:[#allocation5 + $0x78] sm:$0xff]
        %v270 = vld [vmem:[#allocation7] sm:$0x1]
        %v271 = vld [vmem:[#allocation7 + $0x1] sm:$0x1]
        %v272 = vld [vmem:[#allocation7 + $0x2] sm:$0x1]
        %v273 = vlaneseq
        %v274 = vshrl.u32 %v273, 7
        %v275 = vsub.s32 0, %v274
        %v276 = vrot.slane %v270, %v275
        %277 = vmatprep.subr.mxu0 0.0
        %278 = vmatpush1.msra.mxu0 %v269
        %279 = vmatprep.subr.mxu0 0.0
        %280 = vmatpush1.msra.mxu0 %v268
        %281 = vmatprep.subr.mxu0 0.0
        %282 = vmatpush1.msra.mxu0 %v267
        %283 = vmatprep.subr.mxu0 0.0
        %284 = vmatpush1.msra.mxu0 %v266
        %285 = vmatprep.subr.mxu0 0.0
        %286 = vmatpush1.msra.mxu0 %v265
        %287 = vmatprep.subr.mxu0 0.0
        %288 = vmatpush1.msra.mxu0 %v264
        %289 = vmatprep.subr.mxu0 0.0
        %290 = vmatpush1.msra.mxu0 %v263
        %291 = vmatprep.subr.mxu0 0.0
        %292 = vmatpush1.msra.mxu0 %v262
        %293 = vmatprep.subr.mxu0 0.0
        %294 = vmatpush1.msra.mxu0 %v261
        %295 = vmatprep.subr.mxu0 0.0
        %296 = vmatpush1.msra.mxu0 %v260
        %297 = vmatprep.subr.mxu0 0.0
        %298 = vmatpush1.msra.mxu0 %v259
        %299 = vmatprep.subr.mxu0 0.0
        %300 = vmatpush1.msra.mxu0 %v258
        %301 = vmatprep.subr.mxu0 0.0
        %302 = vmatpush1.msra.mxu0 %v257
        %303 = vmatprep.subr.mxu0 0.0
        %304 = vmatpush1.msra.mxu0 %v256
        %305 = vmatprep.subr.mxu0 0.0
        %306 = vmatpush1.msra.mxu0 %v255
        %307 = vmatprep.subr.mxu0 0.0
        %308 = vmatpush1.msra.mxu0 %v254
        %309 = vmatprep.subr.mxu0 0.0
        %310 = vmatpush2.msra.mxu0 0.0
        %311 = vmatprep.subr.mxu0 0.0
        %312 = vmatpush2.msra.mxu0 0.0
        %313 = vmatprep.subr.mxu0 0.0
        %314 = vmatpush2.msra.mxu0 0.0
        %315 = vmatprep.subr.mxu0 0.0
        %316 = vmatpush2.msra.mxu0 0.0
        %317 = vmatprep.subr.mxu0 0.0
        %318 = vmatpush2.msra.mxu0 0.0
        %319 = vmatprep.subr.mxu0 0.0
        %320 = vmatpush2.msra.mxu0 0.0
        %321 = vmatprep.subr.mxu0 0.0
        %322 = vmatpush2.msra.mxu0 0.0
        %323 = vmatprep.subr.mxu0 0.0
        %324 = vmatpush2.msra.mxu0 0.0
        %325 = vmatprep.subr.mxu0 0.0
        %326 = vmatpush2.msra.mxu0 0.0
        %327 = vmatprep.subr.mxu0 0.0
        %328 = vmatpush2.msra.mxu0 0.0
        %329 = vmatprep.subr.mxu0 0.0
        %330 = vmatpush2.msra.mxu0 0.0
        %331 = vmatprep.subr.mxu0 0.0
        %332 = vmatpush2.msra.mxu0 0.0
        %333 = vmatprep.subr.mxu0 0.0
        %334 = vmatpush2.msra.mxu0 0.0
        %335 = vmatprep.subr.mxu0 0.0
        %336 = vmatpush2.msra.mxu0 0.0
        %337 = vmatprep.subr.mxu0 0.0
        %338 = vmatpush2.msra.mxu0 0.0
        %339 = vmatprep.subr.mxu0 0.0
        %340 = vmatpush2.msra.mxu0 0.0
        %341 = vmatprep.mubr.f32.mxu0 0.0
        %342 = vmatmul.mubr.f32.gmra.mxu0 %v253
        %v343 = vpop.f32.mrf.mxu0
        %v344 = vadd.f32 %v276, %v343
        %v345 = vpop.f32.mrf.mxu0
        %346 = vdwg.mxu0
        %v347 = vmax.f32 %v344, 0.0
        %348 = vadd.xlane.f32.xlu0 %v347
        %v349 = vpop.xlane.xlu0 %348
        %v350 = vmul.f32 %v347, %v347
        %351 = vadd.xlane.f32.xlu0 %v350
        %v352 = vpop.xlane.xlu0 %351
        %v353 = vmul.f32 %v349, 0.03125
        %v354 = vmul.f32 %v352, 0.03125
        %v355 = vmul.f32 %v353, %v353
        %v356 = vsub.f32 %v354, %v355
        %v357 = vmax.f32 %v356, 0.0
        %v358 = vsub.f32 %v347, %v353
        %v359 = vadd.f32 %v357, 1e-05
        %v360 = vrsqrt.pop %v359
        %v361 = vmul.f32 %v358, %v360
        %v362 = vlaneseq
        %v363 = vshrl.u32 %v362, 7
        %v364 = vsub.s32 0, %v363
        %v365 = vrot.slane %v271, %v364
        %v366 = vmul.f32 %v361, %v365
        %v367 = vlaneseq
        %v368 = vshrl.u32 %v367, 7
        %v369 = vsub.s32 0, %v368
        %v370 = vrot.slane %v272, %v369
        %v371 = vadd.f32 %v366, %v370
        %v372 = vld [vmem:[#allocation8] sm:$0xff]
        %v373 = vadd.f32 %v371, %v372
        %374 = vst [vmem:[%s252] sm:$0xff] %v373
        %s375 = sand.u32 %s120, 1
        %s376 = scalar_lea.sflag [#allocation4], %s375
        %s377 = sand.u32 %s120, 1
        %s378 = smul.addr %s377, 8
        %s379 = scalar_lea.vmem [#allocation10], %s378
        // Predicated region
        $region53: #{tpu_custom_call.1} parent=35 // pred_check
          %p380 = pneg %p130
        $region54: #{tpu_custom_call.1} parent=35 // pred_check_branch
          %382 = sbr.rel (%p380) target = $region56
        $region55: #{tpu_custom_call.1} parent=35 // pred_region
          %s384 = ssub.s32 128, 128
          %385 = vsyncadd %s376, %s384
          %s386 = smul.addr %s23, 128
          %s387 = scalar_lea.hbm %s4, %s386
          %s389 = sshll.u32 %s379, 4
          %s390 = int_to_ptr.vmem [resolvable:$true] %s389
          %392 = dma.vmem_to_hbm [thread:$0]  %s390, 128, %s387, %s376
        $region56: #{tpu_custom_call.1} parent=35 // pred_fallthru
          _
      $region36: #{tpu_custom_call.1} parent=5 // pred_fallthru
        _
      %p393 = scmp.le.s32.totalorder 2, %s18
      // Predicated region
      $region57: #{tpu_custom_call.1} parent=5 // pred_check
        %p394 = pneg %p393
      $region58: #{tpu_custom_call.1} parent=5 // pred_check_branch
        %396 = sbr.rel (%p394) target = $region60
      $region59: #{tpu_custom_call.1} parent=5 // pred_region
        %s397 = ssub.s32 %s18, 2
        // Predicated region
        $region61: #{tpu_custom_call.1} parent=59 // pred_check
          %p398 = pneg %p136
        $region62: #{tpu_custom_call.1} parent=59 // pred_check_branch
          %400 = sbr.rel (%p398) target = $region64
        $region63: #{tpu_custom_call.1} parent=59 // pred_region
          %s401 = sand.u32 %s121, 1
          %s402 = scalar_lea.sflag [#allocation4], %s401
          %s403 = sand.u32 %s121, 1
          %s404 = smul.addr %s403, 8
          %s405 = scalar_lea.vmem [#allocation10], %s404
          %406 = dma.done %s402, 128
        $region64: #{tpu_custom_call.1} parent=59 // pred_fallthru
          _
      $region60: #{tpu_custom_call.1} parent=5 // pred_fallthru
        _
    $region6: #{tpu_custom_call.1} parent=1 // loop_footer
      %s22 = sadd.s32 1, %s18
    $region7: #{tpu_custom_call.1} parent=1 // loop_footer_branch
      %17 = sbr.rel target = $region3
    $region8: #{tpu_custom_call.1} parent=1 // loop_exit
      _
    %407 = vsyncpa [#allocation3], 1
    %s408 = scalar_lea.sflag [#allocation3], 1
    %409 = vsyncpa %s408, 1
    %410 = vsyncpa [#allocation6], 1
    %411 = vsyncpa [#allocation9], 1
    %412 = vsyncpa [#allocation4], 1
    %s413 = scalar_lea.sflag [#allocation4], 1
    %414 = vsyncpa %s413, 1

// kernel: tpu_custom_call.1
$region0: #{tpu_custom_call.1}
  #allocation0 [shape = 'u32[]', space=smem, size = 0x4, offset = 0x4, fixed_abs, tag = 'smem constant byte address 0x4 - core index']
  #allocation1 [shape = 'u32[144,128]{1,0:T(1,128)}', space=vmem, size = 0x12000, scoped, tag = 'internal scratch']
  %s0 = inlined_call_operand.hbm [shape: f32[16,128], index: 0, kind: input, shape index: {}]
  %s1 = inlined_call_operand.hbm [shape: f32[128,128], index: 1, kind: input, shape index: {}]
  %s2 = inlined_call_operand.hbm [shape: f32[3,128], index: 2, kind: input, shape index: {}]
  %s3 = inlined_call_operand.hbm [shape: f32[8,128], index: 3, kind: input, shape index: {}]
  %s4 = inlined_call_operand.hbm [shape: f32[16,128], index: 4, kind: output, shape index: {}]
  %s5 = sld [smem:[#allocation0]]
  $region65: #{tpu_custom_call.1} parent=0
    _
  %s7 = ssub.s32 1, %s5
  %s8 = scalar_select 0, %s7, %s5
  $region1: #{tpu_custom_call.1} parent=0
    #allocation2 [shape = 'u8[8192]{0}', space=vmem, size = 0x2000, scoped, tag = 'input window, operand 0']
    #allocation3 [shape = 's32[2]{0}', space=sflag, size = 0x8, scoped, tag = 'scoped memory for tpu_custom_call.1']
    #allocation4 [shape = 's32[2]{0}', space=sflag, size = 0x8, scoped, tag = 'scoped memory for tpu_custom_call.1']
    #allocation5 [shape = 'u8[65536]{0}', space=vmem, size = 0x10000, scoped, tag = 'input window, operand 1, single buffered']
    #allocation6 [shape = 's32[1]{0}', space=sflag, size = 0x4, scoped, tag = 'scoped memory for tpu_custom_call.1']
    #allocation7 [shape = 'u8[2048]{0}', space=vmem, size = 0x800, scoped, tag = 'input window, operand 2, single buffered']
    #allocation8 [shape = 'u8[4096]{0}', space=vmem, size = 0x1000, scoped, tag = 'input window, operand 3, single buffered']
    #allocation9 [shape = 's32[1]{0}', space=sflag, size = 0x4, scoped, tag = 'scoped memory for tpu_custom_call.1']
    #allocation10 [shape = 'u8[8192]{0}', space=vmem, size = 0x2000, scoped, tag = 'output window, operand 0']
    %9 = vsyncpa [#allocation3], 0
    %s10 = scalar_lea.sflag [#allocation3], 1
    %11 = vsyncpa %s10, 0
    %12 = vsyncpa [#allocation6], 0
    %13 = vsyncpa [#allocation9], 0
    %14 = vsyncpa [#allocation4], 0
    %s15 = scalar_lea.sflag [#allocation4], 1
    %16 = vsyncpa %s15, 0
    loop: start=0, step=1, limit=4
    $region2: #{tpu_custom_call.1} parent=1 // loop_pre_header
      _
    $region3: #{tpu_custom_call.1} parent=1 // loop_header
      %s18 = sphi 0, %s22
      %p19 = scmp.ge.s32.totalorder %s18, 4
      %s28 = sphi 0, %s30
      %s31 = sphi 0, %s28
      %s32 = sphi 0, %s31
      %s48 = sphi 0, %s32
      %s52 = sphi 0, %s52
      %s54 = sphi 0, %s52
      %s55 = sphi 0, %s54
      %s69 = sphi 0, %s55
      %s73 = sphi 0, %s73
      %s75 = sphi 0, %s73
      %s76 = sphi 0, %s75
      %s90 = sphi 0, %s76
      %s94 = sphi 0, %s94
      %s96 = sphi 0, %s94
      %s97 = sphi 0, %s96
      %s111 = sphi 0, %s97
      %s117 = sphi 0, %s119
      %s120 = sphi 0, %s117
      %s121 = sphi 0, %s120
      %s137 = sphi 0, %s121
    $region4: #{tpu_custom_call.1} parent=1 // loop_header_branch
      %21 = sbr.rel (%p19) target = $region8
    $region5: #{tpu_custom_call.1} parent=1 // loop_body
      %s23 = ssub.s32 %s18, 1
      %s24 = ssub.s32 %s18, 2
      %s25 = sadd.s32 %s18, 1
      %s26 = ssub.s32 %s18, %s25
      %p27 = scmp.eq.s32.totalorder %s26, 0
      %s29 = sadd.s32 %s28, 1
      %s30 = scalar_select %p27, %s28, %s29
      %p33 = pneg %p27
      %p34 = scmp.eq.s32.totalorder %s18, 1
      %p35 = por %p33, %p34
      %p36 = scmp.ne.s32.totalorder %s28, %s31
      %p37 = scmp.eq.s32.totalorder %s18, 0
      %p38 = por %p36, %p37
      %p39 = scmp.ne.s32.totalorder %s28, %s31
      %p40 = scmp.eq.s32.totalorder %s23, 1
      %p41 = por %p39, %p40
      %p42 = scmp.ne.s32.totalorder %s31, %s32
      %p43 = scmp.eq.s32.totalorder %s23, 0
      %p44 = por %p42, %p43
      %p45 = scmp.ne.s32.totalorder %s31, %s32
      %p46 = scmp.eq.s32.totalorder %s24, 1
      %p47 = por %p45, %p46
      %p49 = scmp.ne.s32.totalorder %s32, %s48
      %p50 = scmp.eq.s32.totalorder %s24, 0
      %p51 = por %p49, %p50
      %s53 = sadd.s32 %s52, 1
      %p56 = scmp.eq.s32.totalorder %s18, 1
      %p57 = scmp.ne.s32.totalorder %s52, %s54
      %p58 = scmp.eq.s32.totalorder %s18, 0
      %p59 = por %p57, %p58
      %p60 = scmp.ne.s32.totalorder %s52, %s54
      %p61 = scmp.eq.s32.totalorder %s23, 1
      %p62 = por %p60, %p61
      %p63 = scmp.ne.s32.totalorder %s54, %s55
      %p64 = scmp.eq.s32.totalorder %s23, 0
      %p65 = por %p63, %p64
      %p66 = scmp.ne.s32.totalorder %s54, %s55
      %p67 = scmp.eq.s32.totalorder %s24, 1
      %p68 = por %p66, %p67
      %p70 = scmp.ne.s32.totalorder %s55, %s69
      %p71 = scmp.eq.s32.totalorder %s24, 0
      %p72 = por %p70, %p71
      %s74 = sadd.s32 %s73, 1
      %p77 = scmp.eq.s32.totalorder %s18, 1
      %p78 = scmp.ne.s32.totalorder %s73, %s75
      %p79 = scmp.eq.s32.totalorder %s18, 0
      %p80 = por %p78, %p79
      %p81 = scmp.ne.s32.totalorder %s73, %s75
      %p82 = scmp.eq.s32.totalorder %s23, 1
      %p83 = por %p81, %p82
      %p84 = scmp.ne.s32.totalorder %s75, %s76
      %p85 = scmp.eq.s32.totalorder %s23, 0
      %p86 = por %p84, %p85
      %p87 = scmp.ne.s32.totalorder %s75, %s76
      %p88 = scmp.eq.s32.totalorder %s24, 1
      %p89 = por %p87, %p88
      %p91 = scmp.ne.s32.totalorder %s76, %s90
      %p92 = scmp.eq.s32.totalorder %s24, 0
      %p93 = por %p91, %p92
      %s95 = sadd.s32 %s94, 1
      %p98 = scmp.eq.s32.totalorder %s18, 1
      %p99 = scmp.ne.s32.totalorder %s94, %s96
      %p100 = scmp.eq.s32.totalorder %s18, 0
      %p101 = por %p99, %p100
      %p102 = scmp.ne.s32.totalorder %s94, %s96
      %p103 = scmp.eq.s32.totalorder %s23, 1
      %p104 = por %p102, %p103
      %p105 = scmp.ne.s32.totalorder %s96, %s97
      %p106 = scmp.eq.s32.totalorder %s23, 0
      %p107 = por %p105, %p106
      %p108 = scmp.ne.s32.totalorder %s96, %s97
      %p109 = scmp.eq.s32.totalorder %s24, 1
      %p110 = por %p108, %p109
      %p112 = scmp.ne.s32.totalorder %s97, %s111
      %p113 = scmp.eq.s32.totalorder %s24, 0
      %p114 = por %p112, %p113
      %s115 = ssub.s32 %s18, %s25
      %p116 = scmp.eq.s32.totalorder %s115, 0
      %s118 = sadd.s32 %s117, 1
      %s119 = scalar_select %p116, %s117, %s118
      %p122 = pneg %p116
      %p123 = scmp.eq.s32.totalorder %s18, 1
      %p124 = por %p122, %p123
      %p125 = scmp.ne.s32.totalorder %s117, %s120
      %p126 = scmp.eq.s32.totalorder %s18, 0
      %p127 = por %p125, %p126
      %p128 = scmp.ne.s32.totalorder %s117, %s120
      %p129 = scmp.eq.s32.totalorder %s23, 1
      %p130 = por %p128, %p129
      %p131 = scmp.ne.s32.totalorder %s120, %s121
      %p132 = scmp.eq.s32.totalorder %s23, 0
      %p133 = por %p131, %p132
      %p134 = scmp.ne.s32.totalorder %s120, %s121
      %p135 = scmp.eq.s32.totalorder %s24, 1
      %p136 = por %p134, %p135
      %p138 = scmp.ne.s32.totalorder %s121, %s137
      %p139 = scmp.eq.s32.totalorder %s24, 0
      %p140 = por %p138, %p139
      %p141 = scmp.le.s32.totalorder 1, %s18
      %p142 = scmp.lt.s32.totalorder %s18, 3
      %p143 = pnand %p141, %p142
      %p144 = pneg %p143
      // Predicated region
      $region9: #{tpu_custom_call.1} parent=5 // pred_check
        _
      $region10: #{tpu_custom_call.1} parent=5 // pred_check_branch
        %146 = sbr.rel (%p143) target = $region12
      $region11: #{tpu_custom_call.1} parent=5 // pred_region
        %s147 = ssub.s32 %s18, 1
        // Predicated region
        $region13: #{tpu_custom_call.1} parent=11 // pred_check
          %p148 = pneg %p65
        $region14: #{tpu_custom_call.1} parent=11 // pred_check_branch
          %150 = sbr.rel (%p148) target = $region16
        $region15: #{tpu_custom_call.1} parent=11 // pred_region
          %s152 = ssub.s32 2048, 2048
          %153 = vsyncadd [#allocation6], %s152
          %s154 = sshll.u32 [#allocation5], 4
          %s155 = int_to_ptr.vmem [resolvable:$true] %s154
          %160 = dma.hbm_to_vmem [thread:$0]  %s1, 2048, %s155, [#allocation6], 128, 128, 8
        $region16: #{tpu_custom_call.1} parent=11 // pred_fallthru
          _
        // Predicated region
        $region17: #{tpu_custom_call.1} parent=11 // pred_check
          %p161 = pneg %p86
        $region18: #{tpu_custom_call.1} parent=11 // pred_check_branch
          %163 = sbr.rel (%p161) target = $region20
        $region19: #{tpu_custom_call.1} parent=11 // pred_region
          %s165 = ssub.s32 64, 64
          %166 = vsyncadd [#allocation6], %s165
          %s168 = sshll.u32 [#allocation7], 4
          %s169 = int_to_ptr.vmem [resolvable:$true] %s168
          %171 = dma.hbm_to_vmem [thread:$0]  %s2, 64, %s169, [#allocation6]
        $region20: #{tpu_custom_call.1} parent=11 // pred_fallthru
          _
        // Predicated region
        $region21: #{tpu_custom_call.1} parent=11 // pred_check
          %p172 = pneg %p107
        $region22: #{tpu_custom_call.1} parent=11 // pred_check_branch
          %174 = sbr.rel (%p172) target = $region24
        $region23: #{tpu_custom_call.1} parent=11 // pred_region
          %s176 = ssub.s32 128, 128
          %177 = vsyncadd [#allocation9], %s176
          %s179 = sshll.u32 [#allocation8], 4
          %s180 = int_to_ptr.vmem [resolvable:$true] %s179
          %182 = dma.hbm_to_vmem [thread:$0]  %s3, 128, %s180, [#allocation9]
        $region24: #{tpu_custom_call.1} parent=11 // pred_fallthru
          _
      $region12: #{tpu_custom_call.1} parent=5 // pred_fallthru
        _
      %p183 = scmp.lt.s32.totalorder %s18, 2
      // Predicated region
      $region25: #{tpu_custom_call.1} parent=5 // pred_check
        %p184 = pneg %p183
      $region26: #{tpu_custom_call.1} parent=5 // pred_check_branch
        %186 = sbr.rel (%p184) target = $region28
      $region27: #{tpu_custom_call.1} parent=5 // pred_region
        // Predicated region
        $region29: #{tpu_custom_call.1} parent=27 // pred_check
          %p187 = pneg %p38
        $region30: #{tpu_custom_call.1} parent=27 // pred_check_branch
          %189 = sbr.rel (%p187) target = $region32
        $region31: #{tpu_custom_call.1} parent=27 // pred_region
          %s190 = sand.u32 %s28, 1
          %s191 = scalar_lea.sflag [#allocation3], %s190
          %s192 = sand.u32 %s28, 1
          %s193 = smul.addr %s192, 8
          %s194 = scalar_lea.vmem [#allocation2], %s193
          %s196 = ssub.s32 128, 128
          %197 = vsyncadd %s191, %s196
          %s198 = smul.addr %s18, 128
          %s199 = scalar_lea.hbm %s0, %s198
          %s201 = sshll.u32 %s194, 4
          %s202 = int_to_ptr.vmem [resolvable:$true] %s201
          %204 = dma.hbm_to_vmem [thread:$0]  %s199, 128, %s202, %s191
        $region32: #{tpu_custom_call.1} parent=27 // pred_fallthru
          _
      $region28: #{tpu_custom_call.1} parent=5 // pred_fallthru
        _
      %p205 = scmp.le.s32.totalorder 1, %s18
      %p206 = scmp.lt.s32.totalorder %s18, 3
      %p207 = pnand %p205, %p206
      %p208 = pneg %p207
      // Predicated region
      $region33: #{tpu_custom_call.1} parent=5 // pred_check
        _
      $region34: #{tpu_custom_call.1} parent=5 // pred_check_branch
        %210 = sbr.rel (%p207) target = $region36
      $region35: #{tpu_custom_call.1} parent=5 // pred_region
        %s211 = ssub.s32 %s18, 1
        %s212 = sand.u32 %s31, 1
        %s213 = scalar_lea.sflag [#allocation3], %s212
        %s214 = sand.u32 %s31, 1
        %s215 = smul.addr %s214, 8
        %s216 = scalar_lea.vmem [#allocation2], %s215
        // Predicated region
        $region37: #{tpu_custom_call.1} parent=35 // pred_check
          %p217 = pneg %p44
        $region38: #{tpu_custom_call.1} parent=35 // pred_check_branch
          %219 = sbr.rel (%p217) target = $region40
        $region39: #{tpu_custom_call.1} parent=35 // pred_region
          %220 = dma.done %s213, 128
        $region40: #{tpu_custom_call.1} parent=35 // pred_fallthru
          _
        // Predicated region
        $region41: #{tpu_custom_call.1} parent=35 // pred_check
          %p221 = pneg %p65
        $region42: #{tpu_custom_call.1} parent=35 // pred_check_branch
          %223 = sbr.rel (%p221) target = $region44
        $region43: #{tpu_custom_call.1} parent=35 // pred_region
          %224 = dma.done [#allocation6], 2048
        $region44: #{tpu_custom_call.1} parent=35 // pred_fallthru
          _
        // Predicated region
        $region45: #{tpu_custom_call.1} parent=35 // pred_check
          %p225 = pneg %p86
        $region46: #{tpu_custom_call.1} parent=35 // pred_check_branch
          %227 = sbr.rel (%p225) target = $region48
        $region47: #{tpu_custom_call.1} parent=35 // pred_region
          %228 = dma.done [#allocation6], 64
        $region48: #{tpu_custom_call.1} parent=35 // pred_fallthru
          _
        // Predicated region
        $region49: #{tpu_custom_call.1} parent=35 // pred_check
          %p229 = pneg %p107
        $region50: #{tpu_custom_call.1} parent=35 // pred_check_branch
          %231 = sbr.rel (%p229) target = $region52
        $region51: #{tpu_custom_call.1} parent=35 // pred_region
          %232 = dma.done [#allocation9], 128
        $region52: #{tpu_custom_call.1} parent=35 // pred_fallthru
          _
        %s233 = sand.u32 %s31, 1
        %s234 = scalar_lea.sflag [#allocation3], %s233
        %s235 = sand.u32 %s31, 1
        %s236 = smul.addr %s235, 8
        %s237 = scalar_lea.vmem [#allocation2], %s236
        %p238 = pneg %p44
        %p239 = pneg %p41
        %p240 = pneg %p65
        %p241 = pneg %p62
        %p242 = pneg %p86
        %p243 = pneg %p83
        %p244 = pneg %p107
        %p245 = pneg %p104
        %p246 = pneg %p133
        %p247 = pneg %p130
        %s248 = sand.u32 %s120, 1
        %s249 = scalar_lea.sflag [#allocation4], %s248
        %s250 = sand.u32 %s120, 1
        %s251 = smul.addr %s250, 8
        %s252 = scalar_lea.vmem [#allocation10], %s251
        %v253 = vld [vmem:[%s216] sm:$0xff]
        %v254 = vld [vmem:[#allocation5] sm:$0xff]
        %v255 = vld [vmem:[#allocation5 + $0x8] sm:$0xff]
        %v256 = vld [vmem:[#allocation5 + $0x10] sm:$0xff]
        %v257 = vld [vmem:[#allocation5 + $0x18] sm:$0xff]
        %v258 = vld [vmem:[#allocation5 + $0x20] sm:$0xff]
        %v259 = vld [vmem:[#allocation5 + $0x28] sm:$0xff]
        %v260 = vld [vmem:[#allocation5 + $0x30] sm:$0xff]
        %v261 = vld [vmem:[#allocation5 + $0x38] sm:$0xff]
        %v262 = vld [vmem:[#allocation5 + $0x40] sm:$0xff]
        %v263 = vld [vmem:[#allocation5 + $0x48] sm:$0xff]
        %v264 = vld [vmem:[#allocation5 + $0x50] sm:$0xff]
        %v265 = vld [vmem:[#allocation5 + $0x58] sm:$0xff]
        %v266 = vld [vmem:[#allocation5 + $0x60] sm:$0xff]
        %v267 = vld [vmem:[#allocation5 + $0x68] sm:$0xff]
        %v268 = vld [vmem:[#allocation5 + $0x70] sm:$0xff]
        %v269 = vld [vmem:[#allocation5 + $0x78] sm:$0xff]
        %v270 = vld [vmem:[#allocation7] sm:$0x1]
        %v271 = vld [vmem:[#allocation7 + $0x1] sm:$0x1]
        %v272 = vld [vmem:[#allocation7 + $0x2] sm:$0x1]
        %v273 = vlaneseq
        %v274 = vshrl.u32 %v273, 7
        %v275 = vsub.s32 0, %v274
        %v276 = vrot.slane %v270, %v275
        %277 = vmatprep.subr.mxu0 0.0
        %278 = vmatpush1.msra.mxu0 %v269
        %279 = vmatprep.subr.mxu0 0.0
        %280 = vmatpush1.msra.mxu0 %v268
        %281 = vmatprep.subr.mxu0 0.0
        %282 = vmatpush1.msra.mxu0 %v267
        %283 = vmatprep.subr.mxu0 0.0
        %284 = vmatpush1.msra.mxu0 %v266
        %285 = vmatprep.subr.mxu0 0.0
        %286 = vmatpush1.msra.mxu0 %v265
        %287 = vmatprep.subr.mxu0 0.0
        %288 = vmatpush1.msra.mxu0 %v264
        %289 = vmatprep.subr.mxu0 0.0
        %290 = vmatpush1.msra.mxu0 %v263
        %291 = vmatprep.subr.mxu0 0.0
        %292 = vmatpush1.msra.mxu0 %v262
        %293 = vmatprep.subr.mxu0 0.0
        %294 = vmatpush1.msra.mxu0 %v261
        %295 = vmatprep.subr.mxu0 0.0
        %296 = vmatpush1.msra.mxu0 %v260
        %297 = vmatprep.subr.mxu0 0.0
        %298 = vmatpush1.msra.mxu0 %v259
        %299 = vmatprep.subr.mxu0 0.0
        %300 = vmatpush1.msra.mxu0 %v258
        %301 = vmatprep.subr.mxu0 0.0
        %302 = vmatpush1.msra.mxu0 %v257
        %303 = vmatprep.subr.mxu0 0.0
        %304 = vmatpush1.msra.mxu0 %v256
        %305 = vmatprep.subr.mxu0 0.0
        %306 = vmatpush1.msra.mxu0 %v255
        %307 = vmatprep.subr.mxu0 0.0
        %308 = vmatpush1.msra.mxu0 %v254
        %309 = vmatprep.subr.mxu0 0.0
        %310 = vmatpush2.msra.mxu0 0.0
        %311 = vmatprep.subr.mxu0 0.0
        %312 = vmatpush2.msra.mxu0 0.0
        %313 = vmatprep.subr.mxu0 0.0
        %314 = vmatpush2.msra.mxu0 0.0
        %315 = vmatprep.subr.mxu0 0.0
        %316 = vmatpush2.msra.mxu0 0.0
        %317 = vmatprep.subr.mxu0 0.0
        %318 = vmatpush2.msra.mxu0 0.0
        %319 = vmatprep.subr.mxu0 0.0
        %320 = vmatpush2.msra.mxu0 0.0
        %321 = vmatprep.subr.mxu0 0.0
        %322 = vmatpush2.msra.mxu0 0.0
        %323 = vmatprep.subr.mxu0 0.0
        %324 = vmatpush2.msra.mxu0 0.0
        %325 = vmatprep.subr.mxu0 0.0
        %326 = vmatpush2.msra.mxu0 0.0
        %327 = vmatprep.subr.mxu0 0.0
        %328 = vmatpush2.msra.mxu0 0.0
        %329 = vmatprep.subr.mxu0 0.0
        %330 = vmatpush2.msra.mxu0 0.0
        %331 = vmatprep.subr.mxu0 0.0
        %332 = vmatpush2.msra.mxu0 0.0
        %333 = vmatprep.subr.mxu0 0.0
        %334 = vmatpush2.msra.mxu0 0.0
        %335 = vmatprep.subr.mxu0 0.0
        %336 = vmatpush2.msra.mxu0 0.0
        %337 = vmatprep.subr.mxu0 0.0
        %338 = vmatpush2.msra.mxu0 0.0
        %339 = vmatprep.subr.mxu0 0.0
        %340 = vmatpush2.msra.mxu0 0.0
        %341 = vmatprep.mubr.f32.mxu0 0.0
        %342 = vmatmul.mubr.f32.gmra.mxu0 %v253
        %v343 = vpop.f32.mrf.mxu0
        %v344 = vadd.f32 %v276, %v343
        %v345 = vpop.f32.mrf.mxu0
        %346 = vdwg.mxu0
        %v347 = vmax.f32 %v344, 0.0
        %348 = vadd.xlane.f32.xlu0 %v347
        %v349 = vpop.xlane.xlu0 %348
        %v350 = vmul.f32 %v347, %v347
        %351 = vadd.xlane.f32.xlu0 %v350
        %v352 = vpop.xlane.xlu0 %351
        %v353 = vmul.f32 %v349, 0.03125
        %v354 = vmul.f32 %v352, 0.03125
        %v355 = vmul.f32 %v353, %v353
        %v356 = vsub.f32 %v354, %v355
        %v357 = vmax.f32 %v356, 0.0
        %v358 = vsub.f32 %v347, %v353
        %v359 = vadd.f32 %v357, 1e-05
        %v360 = vrsqrt.pop %v359
        %v361 = vmul.f32 %v358, %v360
        %v362 = vlaneseq
        %v363 = vshrl.u32 %v362, 7
        %v364 = vsub.s32 0, %v363
        %v365 = vrot.slane %v271, %v364
        %v366 = vmul.f32 %v361, %v365
        %v367 = vlaneseq
        %v368 = vshrl.u32 %v367, 7
        %v369 = vsub.s32 0, %v368
        %v370 = vrot.slane %v272, %v369
        %v371 = vadd.f32 %v366, %v370
        %v372 = vld [vmem:[#allocation8] sm:$0xff]
        %v373 = vadd.f32 %v371, %v372
        %374 = vst [vmem:[%s252] sm:$0xff] %v373
        %s375 = sand.u32 %s120, 1
        %s376 = scalar_lea.sflag [#allocation4], %s375
        %s377 = sand.u32 %s120, 1
        %s378 = smul.addr %s377, 8
        %s379 = scalar_lea.vmem [#allocation10], %s378
        // Predicated region
        $region53: #{tpu_custom_call.1} parent=35 // pred_check
          %p380 = pneg %p130
        $region54: #{tpu_custom_call.1} parent=35 // pred_check_branch
          %382 = sbr.rel (%p380) target = $region56
        $region55: #{tpu_custom_call.1} parent=35 // pred_region
          %s384 = ssub.s32 128, 128
          %385 = vsyncadd %s376, %s384
          %s386 = smul.addr %s23, 128
          %s387 = scalar_lea.hbm %s4, %s386
          %s389 = sshll.u32 %s379, 4
          %s390 = int_to_ptr.vmem [resolvable:$true] %s389
          %392 = dma.vmem_to_hbm [thread:$0]  %s390, 128, %s387, %s376
        $region56: #{tpu_custom_call.1} parent=35 // pred_fallthru
          _
      $region36: #{tpu_custom_call.1} parent=5 // pred_fallthru
        _
      %p393 = scmp.le.s32.totalorder 2, %s18
      // Predicated region
      $region57: #{tpu_custom_call.1} parent=5 // pred_check
        %p394 = pneg %p393
      $region58: #{tpu_custom_call.1} parent=5 // pred_check_branch
        %396 = sbr.rel (%p394) target = $region60
      $region59: #{tpu_custom_call.1} parent=5 // pred_region
        %s397 = ssub.s32 %s18, 2
        // Predicated region
        $region61: #{tpu_custom_call.1} parent=59 // pred_check
          %p398 = pneg %p136
        $region62: #{tpu_custom_call.1} parent=59 // pred_check_branch
          %400 = sbr.rel (%p398) target = $region64
        $region63: #{tpu_custom_call.1} parent=59 // pred_region
          %s401 = sand.u32 %s121, 1
          %s402 = scalar_lea.sflag [#allocation4], %s401
          %s403 = sand.u32 %s121, 1
          %s404 = smul.addr %s403, 8
          %s405 = scalar_lea.vmem [#allocation10], %s404
          %406 = dma.done %s402, 128
        $region64: #{tpu_custom_call.1} parent=59 // pred_fallthru
          _
      $region60: #{tpu_custom_call.1} parent=5 // pred_fallthru
        _
    $region6: #{tpu_custom_call.1} parent=1 // loop_footer
      %s22 = sadd.s32 1, %s18
    $region7: #{tpu_custom_call.1} parent=1 // loop_footer_branch
      %17 = sbr.rel target = $region3
    $region8: #{tpu_custom_call.1} parent=1 // loop_exit
      _
    %407 = vsyncpa [#allocation3], 1
    %s408 = scalar_lea.sflag [#allocation3], 1
    %409 = vsyncpa %s408, 1
    %410 = vsyncpa [#allocation6], 1
    %411 = vsyncpa [#allocation9], 1
    %412 = vsyncpa [#allocation4], 1
    %s413 = scalar_lea.sflag [#allocation4], 1
    %414 = vsyncpa %s413, 1

</llo_original>
